<compile_context>
chip_gen: v7x
topology: tpu7x:2x2x1
jax: 0.10.0
libtpu: 0.0.40
codegen_flags: <defaults>
</compile_context>

<pallas_src>
import jax
import jax.numpy as jnp
from jax.experimental import pallas as pl
from jax.experimental.pallas import tpu as pltpu


def _round_up(n: int, m: int) -> int:
    return ((n + m - 1) // m) * m


def merge_layer_kernel(x1_ref, x2_ref, w1a_ref, w1b_ref, b1_ref, w2_ref, b2_ref,
                       out_ref):
    # fc1 applied to the (virtually) concatenated input as two MXU pushes —
    # no lane-axis concat / VMEM copy.  f32 accumulation throughout.
    h = jnp.dot(x1_ref[...], w1a_ref[...], preferred_element_type=jnp.float32)
    h = h + jnp.dot(x2_ref[...], w1b_ref[...], preferred_element_type=jnp.float32)
    h = jnp.maximum(h + b1_ref[...], 0.0)                        # ReLU (VPU)
    out = jnp.dot(h, w2_ref[...], preferred_element_type=jnp.float32) + b2_ref[...]
    out_ref[...] = out.astype(out_ref.dtype)


def prepare_merge_layer_params(w1, b1, w2, b2, dim1):
    """Run ONCE at parameter-load time (off the per-call hot path).

    Converts PyTorch-layout params
        w1: [dim3, dim1+dim2], b1: [dim3], w2: [dim4, dim3], b2: [dim4]
    into kernel-ready tensors:
        w1a_t: [dim1, pad(dim3)]   fc1 weight block acting on x1
        w1b_t: [dim2, pad(dim3)]   fc1 weight block acting on x2
        b1p  : [1, pad(dim3)]
        w2t  : [pad(dim3), pad(dim4)]
        b2p  : [1, pad(dim4)]
    dim3/dim4 are zero-padded to multiples of 128 (lane-dense MXU operands and
    unmasked output stores).  Padding is numerics-exact: padded b1/weights are
    zero, ReLU(0)=0, and padded w2 rows / b2 columns contribute nothing.
    """
    dim3 = w1.shape[0]
    dim4 = w2.shape[0]
    dim3_p = _round_up(dim3, 128)
    dim4_p = _round_up(dim4, 128)

    w1t = jnp.pad(jnp.transpose(w1), ((0, 0), (0, dim3_p - dim3)))  # [dim1+dim2, dim3_p]
    w1a_t = w1t[:dim1]                                              # [dim1, dim3_p]
    w1b_t = w1t[dim1:]                                              # [dim2, dim3_p]
    b1p = jnp.pad(b1, (0, dim3_p - dim3)).reshape(1, dim3_p)
    w2t = jnp.pad(jnp.transpose(w2),
                  ((0, dim3_p - dim3), (0, dim4_p - dim4)))         # [dim3_p, dim4_p]
    b2p = jnp.pad(b2, (0, dim4_p - dim4)).reshape(1, dim4_p)
    return w1a_t, w1b_t, b1p, w2t, b2p


def _pick_tile_b(batch: int) -> int:
    # Small batches: one block exactly covering the batch (block dim == full
    # array dim satisfies the (8,128) rule); the call is launch-overhead-bound
    # at this size anyway.
    if batch <= 128:
        return batch
    # Large batches: keep tiles big (per-grid-step overhead ~0.35us) but
    # guarantee multiple grid steps so v7x's two TensorCores both get work
    # (batch axis is "parallel") and activation DMAs double-buffer; cap at
    # 1024 rows so f32 tiles stay well inside v7x's 64 MiB physical VMEM and
    # v5e's 16 MiB scoped default.
    return max(128, min(1024, _round_up(pl.cdiv(batch, 8), 8)))


def merge_layer(x1, x2, w1a_t, w1b_t, b1, w2t, b2, *, out_features=None,
                trim_output=True):
    """x1: [B, dim1], x2: [B, dim2]; params already prepared (see above).

    Returns [B, out_features] when trim_output, else the lane-dense padded slab
    [B, pad(dim4)] (preferred when a downstream kernel consumes it directly,
    which avoids the per-call slice).
    """
    B, dim1 = x1.shape
    dim2 = x2.shape[1]
    dim3_p = w1a_t.shape[1]
    dim4_p = w2t.shape[1]

    tile_b = _pick_tile_b(B)
    grid = (pl.cdiv(B, tile_b),)

    # VMEM budget: resident weights/biases (default double-buffered) +
    # double-buffered activation/hidden/output tiles + slack; capped at 48 MiB
    # so it also fits v7x's 64 MiB physical VMEM.
    weight_bytes = 4 * (dim1 * dim3_p + dim2 * dim3_p + dim3_p * dim4_p
                        + dim3_p + dim4_p)
    act_bytes = 4 * tile_b * (dim1 + dim2 + dim3_p + dim4_p)
    vmem_limit = int(min(48 * 2**20,
                         max(32 * 2**20, 2 * weight_bytes + 2 * act_bytes + (4 << 20))))

    flops = 2 * B * ((dim1 + dim2) * dim3_p + dim3_p * dim4_p)
    bytes_accessed = weight_bytes + 4 * B * (dim1 + dim2 + dim4_p)

    out = pl.pallas_call(
        merge_layer_kernel,
        out_shape=jax.ShapeDtypeStruct((B, dim4_p), x1.dtype),
        grid_spec=pltpu.PrefetchScalarGridSpec(
            num_scalar_prefetch=0,
            grid=grid,
            in_specs=[
                # Activations: tiled over the batch axis.
                pl.BlockSpec((tile_b, dim1), lambda i: (i, 0)),
                pl.BlockSpec((tile_b, dim2), lambda i: (i, 0)),
                # Weights / biases: constant index_map -> VMEM-resident, DMA'd
                # only once.  (Single-buffering them via pipeline_mode is the
                # next lever once dim3 grows large enough for the second buffer
                # to matter against the VMEM budget.)
                pl.BlockSpec((dim1, dim3_p), lambda i: (0, 0)),
                pl.BlockSpec((dim2, dim3_p), lambda i: (0, 0)),
                pl.BlockSpec((1, dim3_p), lambda i: (0, 0)),
                pl.BlockSpec((dim3_p, dim4_p), lambda i: (0, 0)),
                pl.BlockSpec((1, dim4_p), lambda i: (0, 0)),
            ],
            out_specs=pl.BlockSpec((tile_b, dim4_p), lambda i: (i, 0)),
        ),
        compiler_params=pltpu.CompilerParams(
            dimension_semantics=("parallel",),
            vmem_limit_bytes=vmem_limit),
        cost_estimate=pl.CostEstimate(flops=flops, transcendentals=0,
                                      bytes_accessed=bytes_accessed),
    )(x1, x2, w1a_t, w1b_t, b1, w2t, b2)

    if trim_output and out_features is not None and out_features != dim4_p:
        # Restores the module's [B, dim4] output; one cheap XLA slice per call.
        # Pass trim_output=False if the consumer can take the padded slab.
        out = out[:, :out_features]
    return out


def _xavier_normal(key, out_f, in_f):
    std = (2.0 / (in_f + out_f)) ** 0.5
    return std * jax.random.normal(key, (out_f, in_f), dtype=jnp.float32)


def _linear_bias(key, in_f, out_f):
    bound = 1.0 / (in_f ** 0.5)
    return jax.random.uniform(key, (out_f,), minval=-bound, maxval=bound,
                              dtype=jnp.float32)


if __name__ == "__main__":
    # MergeLayer(dim1, dim2, dim3, dim4) — small demo shapes.  NOTE: at this
    # size the call is launch/DMA-overhead-bound; the tiling/padding levers pay
    # off once B and the feature dims are in the hundreds.
    B, dim1, dim2, dim3, dim4 = 8, 16, 16, 32, 8

    key = jax.random.PRNGKey(0)
    k_x1, k_x2, k_w1, k_b1, k_w2, k_b2 = jax.random.split(key, 6)

    x1 = jax.random.normal(k_x1, (B, dim1), dtype=jnp.float32)
    x2 = jax.random.normal(k_x2, (B, dim2), dtype=jnp.float32)

    # Parameters in the module's native (PyTorch) layout.
    w1 = _xavier_normal(k_w1, dim3, dim1 + dim2)   # fc1.weight [dim3, dim1+dim2]
    b1 = _linear_bias(k_b1, dim1 + dim2, dim3)     # fc1.bias   [dim3]
    w2 = _xavier_normal(k_w2, dim4, dim3)          # fc2.weight [dim4, dim3]
    b2 = _linear_bias(k_b2, dim3, dim4)            # fc2.bias   [dim4]

    # One-time parameter preparation (transpose / split / lane padding).
    params = prepare_merge_layer_params(w1, b1, w2, b2, dim1)
    params = jax.block_until_ready(params)

    merge_fn = jax.jit(merge_layer,
                       static_argnames=("out_features", "trim_output"))
    out = merge_fn(x1, x2, *params, out_features=dim4)
    jax.block_until_ready(out)

    # Pure-JAX reference of the exact PyTorch semantics.
    x = jnp.concatenate([x1, x2], axis=1)
    h_ref = jnp.maximum(x @ w1.T + b1, 0.0)
    ref = h_ref @ w2.T + b2
    assert out.shape == (B, dim4)
    assert jnp.allclose(out, ref, atol=1e-5, rtol=1e-5)

    print("KERNEL_OK")
</pallas_src>

<mosaic_0001>
module attributes {stable_mosaic.version = 11 : i64} {
  func.func @merge_layer_kernel(%arg0: i32, %arg1: memref<8x16xf32, #tpu.memory_space<vmem>>, %arg2: memref<8x16xf32, #tpu.memory_space<vmem>>, %arg3: memref<16x128xf32, #tpu.memory_space<vmem>>, %arg4: memref<16x128xf32, #tpu.memory_space<vmem>>, %arg5: memref<1x128xf32, #tpu.memory_space<vmem>>, %arg6: memref<128x128xf32, #tpu.memory_space<vmem>>, %arg7: memref<1x128xf32, #tpu.memory_space<vmem>>, %arg8: memref<8x128xf32, #tpu.memory_space<vmem>>) attributes {dimension_semantics = [#tpu.dimension_semantics<parallel>], iteration_bounds = array<i64: 1>, scalar_prefetch = 0 : i64, scratch_operands = 0 : i64, tpu.core_type = #tpu.core_type<tc>, window_params = [{transform_indices = @transform_0, window_bounds = array<i64: 8, 16>}, {transform_indices = @transform_1, window_bounds = array<i64: 8, 16>}, {pipeline_mode = #tpu.pipeline_mode<synchronous>, transform_indices = @transform_2, window_bounds = array<i64: 16, 128>}, {pipeline_mode = #tpu.pipeline_mode<synchronous>, transform_indices = @transform_3, window_bounds = array<i64: 16, 128>}, {pipeline_mode = #tpu.pipeline_mode<synchronous>, transform_indices = @transform_4, window_bounds = array<i64: 1, 128>}, {pipeline_mode = #tpu.pipeline_mode<synchronous>, transform_indices = @transform_5, window_bounds = array<i64: 128, 128>}, {pipeline_mode = #tpu.pipeline_mode<synchronous>, transform_indices = @transform_6, window_bounds = array<i64: 1, 128>}, {transform_indices = @transform_7, window_bounds = array<i64: 8, 128>}]} {
    %c0 = arith.constant 0 : index
    %c0_0 = arith.constant 0 : index
    %0 = vector.load %arg1[%c0, %c0_0] : memref<8x16xf32, #tpu.memory_space<vmem>>, vector<8x16xf32>
    %c0_1 = arith.constant 0 : index
    %c0_2 = arith.constant 0 : index
    %1 = vector.load %arg3[%c0_1, %c0_2] : memref<16x128xf32, #tpu.memory_space<vmem>>, vector<16x128xf32>
    %cst = arith.constant dense<0.000000e+00> : vector<8x128xf32>
    %2 = tpu.matmul %0, %1, %cst {dimension_numbers = #tpu.dot_dimension_numbers<[1], [0], [0], [1], [0, 0, 1, 1], [], []>} : vector<8x16xf32>, vector<16x128xf32>, vector<8x128xf32> -> vector<8x128xf32>
    %c0_3 = arith.constant 0 : index
    %c0_4 = arith.constant 0 : index
    %3 = vector.load %arg2[%c0_3, %c0_4] : memref<8x16xf32, #tpu.memory_space<vmem>>, vector<8x16xf32>
    %c0_5 = arith.constant 0 : index
    %c0_6 = arith.constant 0 : index
    %4 = vector.load %arg4[%c0_5, %c0_6] : memref<16x128xf32, #tpu.memory_space<vmem>>, vector<16x128xf32>
    %cst_7 = arith.constant dense<0.000000e+00> : vector<8x128xf32>
    %5 = tpu.matmul %3, %4, %cst_7 {dimension_numbers = #tpu.dot_dimension_numbers<[1], [0], [0], [1], [0, 0, 1, 1], [], []>} : vector<8x16xf32>, vector<16x128xf32>, vector<8x128xf32> -> vector<8x128xf32>
    %6 = arith.addf %2, %5 : vector<8x128xf32>
    %c0_8 = arith.constant 0 : index
    %c0_9 = arith.constant 0 : index
    %7 = vector.load %arg5[%c0_8, %c0_9] : memref<1x128xf32, #tpu.memory_space<vmem>>, vector<1x128xf32>
    %8 = vector.broadcast %7 : vector<1x128xf32> to vector<8x128xf32>
    %9 = arith.addf %6, %8 : vector<8x128xf32>
    %cst_10 = arith.constant 0.000000e+00 : f32
    %10 = vector.broadcast %cst_10 : f32 to vector<8x128xf32>
    %11 = arith.maximumf %9, %10 : vector<8x128xf32>
    %c0_11 = arith.constant 0 : index
    %c0_12 = arith.constant 0 : index
    %12 = vector.load %arg6[%c0_11, %c0_12] : memref<128x128xf32, #tpu.memory_space<vmem>>, vector<128x128xf32>
    %cst_13 = arith.constant dense<0.000000e+00> : vector<8x128xf32>
    %13 = tpu.matmul %11, %12, %cst_13 {dimension_numbers = #tpu.dot_dimension_numbers<[1], [0], [0], [1], [0, 0, 1, 1], [], []>} : vector<8x128xf32>, vector<128x128xf32>, vector<8x128xf32> -> vector<8x128xf32>
    %c0_14 = arith.constant 0 : index
    %c0_15 = arith.constant 0 : index
    %14 = vector.load %arg7[%c0_14, %c0_15] : memref<1x128xf32, #tpu.memory_space<vmem>>, vector<1x128xf32>
    %15 = vector.broadcast %14 : vector<1x128xf32> to vector<8x128xf32>
    %16 = arith.addf %13, %15 : vector<8x128xf32>
    %c0_16 = arith.constant 0 : index
    %c0_17 = arith.constant 0 : index
    %17 = vector.load %arg8[%c0_16, %c0_17] : memref<8x128xf32, #tpu.memory_space<vmem>>, vector<8x128xf32>
    tpu.vector_store %arg8[%c0_16, %c0_17], %16 {strides = array<i32>} : memref<8x128xf32, #tpu.memory_space<vmem>>, vector<8x128xf32>,
    return
  }
  func.func @transform_0(%arg0: i32) -> (i32, i32) {
    %c0_i32 = arith.constant 0 : i32
    %c0_i32_0 = arith.constant 0 : i32
    return %arg0, %c0_i32 : i32, i32
  }
  func.func @transform_1(%arg0: i32) -> (i32, i32) {
    %c0_i32 = arith.constant 0 : i32
    %c0_i32_0 = arith.constant 0 : i32
    return %arg0, %c0_i32 : i32, i32
  }
  func.func @transform_2(%arg0: i32) -> (i32, i32) {
    %c0_i32 = arith.constant 0 : i32
    %c0_i32_0 = arith.constant 0 : i32
    %c0_i32_1 = arith.constant 0 : i32
    return %c0_i32, %c0_i32_0 : i32, i32
  }
  func.func @transform_3(%arg0: i32) -> (i32, i32) {
    %c0_i32 = arith.constant 0 : i32
    %c0_i32_0 = arith.constant 0 : i32
    %c0_i32_1 = arith.constant 0 : i32
    return %c0_i32, %c0_i32_0 : i32, i32
  }
  func.func @transform_4(%arg0: i32) -> (i32, i32) {
    %c0_i32 = arith.constant 0 : i32
    %c0_i32_0 = arith.constant 0 : i32
    %c0_i32_1 = arith.constant 0 : i32
    return %c0_i32, %c0_i32_0 : i32, i32
  }
  func.func @transform_5(%arg0: i32) -> (i32, i32) {
    %c0_i32 = arith.constant 0 : i32
    %c0_i32_0 = arith.constant 0 : i32
    %c0_i32_1 = arith.constant 0 : i32
    return %c0_i32, %c0_i32_0 : i32, i32
  }
  func.func @transform_6(%arg0: i32) -> (i32, i32) {
    %c0_i32 = arith.constant 0 : i32
    %c0_i32_0 = arith.constant 0 : i32
    %c0_i32_1 = arith.constant 0 : i32
    return %c0_i32, %c0_i32_0 : i32, i32
  }
  func.func @transform_7(%arg0: i32) -> (i32, i32) {
    %c0_i32 = arith.constant 0 : i32
    %c0_i32_0 = arith.constant 0 : i32
    return %arg0, %c0_i32 : i32, i32
  }
}

</mosaic_0001>

<llo_original>
// kernel: merge_layer.1
$region0: #{merge_layer.1}
  #allocation0 [shape = 'u32[]', space=smem, size = 0x4, offset = 0x4, fixed_abs, tag = 'smem constant byte address 0x4 - core index']
  #allocation1 [shape = 'u32[144,128]{1,0:T(1,128)}', space=vmem, size = 0x12000, scoped, tag = 'internal scratch']
  %s0 = inlined_call_operand.hbm [shape: f32[8,16], index: 0, kind: input, shape index: {}]
  %s1 = inlined_call_operand.hbm [shape: f32[8,16], index: 1, kind: input, shape index: {}]
  %s2 = inlined_call_operand.hbm [shape: f32[16,128], index: 2, kind: input, shape index: {}]
  %s3 = inlined_call_operand.hbm [shape: f32[16,128], index: 3, kind: input, shape index: {}]
  %s4 = inlined_call_operand.vmem [shape: f32[1,128], index: 4, kind: input, shape index: {}]
  %s5 = inlined_call_operand.hbm [shape: f32[128,128], index: 5, kind: input, shape index: {}]
  %s6 = inlined_call_operand.vmem [shape: f32[1,128], index: 6, kind: input, shape index: {}]
  %s7 = inlined_call_operand.hbm [shape: f32[8,128], index: 7, kind: output, shape index: {}]
  %s8 = sld [smem:[#allocation0]]
  $region58: #{merge_layer.1} parent=0
    _
  %s10 = ssub.s32 1, %s8
  %s11 = scalar_select 0, %s10, %s8
  $region1: #{merge_layer.1} parent=0
    #allocation2 [shape = 'u8[4096]{0}', space=vmem, size = 0x1000, scoped, tag = 'input window, operand 0, single buffered']
    #allocation3 [shape = 's32[1]{0}', space=sflag, size = 0x4, scoped, tag = 'scoped memory for merge_layer.1']
    #allocation4 [shape = 's32[1]{0}', space=sflag, size = 0x4, scoped, tag = 'scoped memory for merge_layer.1']
    #allocation5 [shape = 'u8[4096]{0}', space=vmem, size = 0x1000, scoped, tag = 'input window, operand 1, single buffered']
    #allocation6 [shape = 's32[1]{0}', space=sflag, size = 0x4, scoped, tag = 'scoped memory for merge_layer.1']
    #allocation7 [shape = 'u8[8192]{0}', space=vmem, size = 0x2000, scoped, tag = 'input window, operand 2, single buffered']
    #allocation8 [shape = 'u8[8192]{0}', space=vmem, size = 0x2000, scoped, tag = 'input window, operand 3, single buffered']
    #allocation9 [shape = 's32[1]{0}', space=sflag, size = 0x4, scoped, tag = 'scoped memory for merge_layer.1']
    #allocation10 [shape = 'u8[65536]{0}', space=vmem, size = 0x10000, scoped, tag = 'input window, operand 5, single buffered']
    #allocation11 [shape = 'u8[4096]{0}', space=vmem, size = 0x1000, scoped, tag = 'output window, operand 0, single buffered']
    %12 = vsyncpa [#allocation3], 0
    %13 = vsyncpa [#allocation6], 0
    %14 = vsyncpa [#allocation9], 0
    %15 = vsyncpa [#allocation4], 0
    // Predicated region
    $region2: #{merge_layer.1} parent=1 // pred_check
      _
    $region3: #{merge_layer.1} parent=1 // pred_check_branch
      %17 = sbr.rel (0) target = $region5
    $region4: #{merge_layer.1} parent=1 // pred_region
      %s19 = ssub.s32 128, 128
      %20 = vsyncadd [#allocation3], %s19
      %s22 = sshll.u32 [#allocation2], 4
      %s23 = int_to_ptr.vmem [resolvable:$true] %s22
      %25 = dma.hbm_to_vmem [thread:$0]  %s0, 128, %s23, [#allocation3]
    $region5: #{merge_layer.1} parent=1 // pred_fallthru
      _
    // Predicated region
    $region6: #{merge_layer.1} parent=1 // pred_check
      _
    $region7: #{merge_layer.1} parent=1 // pred_check_branch
      %27 = sbr.rel (0) target = $region9
    $region8: #{merge_layer.1} parent=1 // pred_region
      %s29 = ssub.s32 128, 128
      %30 = vsyncadd [#allocation6], %s29
      %s32 = sshll.u32 [#allocation5], 4
      %s33 = int_to_ptr.vmem [resolvable:$true] %s32
      %35 = dma.hbm_to_vmem [thread:$0]  %s1, 128, %s33, [#allocation6]
    $region9: #{merge_layer.1} parent=1 // pred_fallthru
      _
    // Predicated region
    $region10: #{merge_layer.1} parent=1 // pred_check
      _
    $region11: #{merge_layer.1} parent=1 // pred_check_branch
      %37 = sbr.rel (0) target = $region13
    $region12: #{merge_layer.1} parent=1 // pred_region
      %s39 = ssub.s32 256, 256
      %40 = vsyncadd [#allocation6], %s39
      %s41 = sshll.u32 [#allocation7], 4
      %s42 = int_to_ptr.vmem [resolvable:$true] %s41
      %47 = dma.hbm_to_vmem [thread:$0]  %s2, 256, %s42, [#allocation6], 128, 128, 8
    $region13: #{merge_layer.1} parent=1 // pred_fallthru
      _
    // Predicated region
    $region14: #{merge_layer.1} parent=1 // pred_check
      _
    $region15: #{merge_layer.1} parent=1 // pred_check_branch
      %49 = sbr.rel (0) target = $region17
    $region16: #{merge_layer.1} parent=1 // pred_region
      %s51 = ssub.s32 256, 256
      %52 = vsyncadd [#allocation9], %s51
      %s53 = sshll.u32 [#allocation8], 4
      %s54 = int_to_ptr.vmem [resolvable:$true] %s53
      %59 = dma.hbm_to_vmem [thread:$0]  %s3, 256, %s54, [#allocation9], 128, 128, 8
    $region17: #{merge_layer.1} parent=1 // pred_fallthru
      _
    // Predicated region
    $region18: #{merge_layer.1} parent=1 // pred_check
      _
    $region19: #{merge_layer.1} parent=1 // pred_check_branch
      %61 = sbr.rel (0) target = $region21
    $region20: #{merge_layer.1} parent=1 // pred_region
      _
    $region21: #{merge_layer.1} parent=1 // pred_fallthru
      _
    // Predicated region
    $region22: #{merge_layer.1} parent=1 // pred_check
      _
    $region23: #{merge_layer.1} parent=1 // pred_check_branch
      %63 = sbr.rel (0) target = $region25
    $region24: #{merge_layer.1} parent=1 // pred_region
      %s65 = ssub.s32 2048, 2048
      %66 = vsyncadd [#allocation9], %s65
      %s67 = sshll.u32 [#allocation10], 4
      %s68 = int_to_ptr.vmem [resolvable:$true] %s67
      %73 = dma.hbm_to_vmem [thread:$0]  %s5, 2048, %s68, [#allocation9], 128, 128, 8
    $region25: #{merge_layer.1} parent=1 // pred_fallthru
      _
    // Predicated region
    $region26: #{merge_layer.1} parent=1 // pred_check
      _
    $region27: #{merge_layer.1} parent=1 // pred_check_branch
      %75 = sbr.rel (0) target = $region29
    $region28: #{merge_layer.1} parent=1 // pred_region
      _
    $region29: #{merge_layer.1} parent=1 // pred_fallthru
      _
    // Predicated region
    $region30: #{merge_layer.1} parent=1 // pred_check
      _
    $region31: #{merge_layer.1} parent=1 // pred_check_branch
      %77 = sbr.rel (0) target = $region33
    $region32: #{merge_layer.1} parent=1 // pred_region
      %78 = dma.done [#allocation3], 128
    $region33: #{merge_layer.1} parent=1 // pred_fallthru
      _
    // Predicated region
    $region34: #{merge_layer.1} parent=1 // pred_check
      _
    $region35: #{merge_layer.1} parent=1 // pred_check_branch
      %80 = sbr.rel (0) target = $region37
    $region36: #{merge_layer.1} parent=1 // pred_region
      %81 = dma.done [#allocation6], 128
    $region37: #{merge_layer.1} parent=1 // pred_fallthru
      _
    // Predicated region
    $region38: #{merge_layer.1} parent=1 // pred_check
      _
    $region39: #{merge_layer.1} parent=1 // pred_check_branch
      %83 = sbr.rel (0) target = $region41
    $region40: #{merge_layer.1} parent=1 // pred_region
      %84 = dma.done [#allocation6], 256
    $region41: #{merge_layer.1} parent=1 // pred_fallthru
      _
    // Predicated region
    $region42: #{merge_layer.1} parent=1 // pred_check
      _
    $region43: #{merge_layer.1} parent=1 // pred_check_branch
      %86 = sbr.rel (0) target = $region45
    $region44: #{merge_layer.1} parent=1 // pred_region
      %87 = dma.done [#allocation9], 256
    $region45: #{merge_layer.1} parent=1 // pred_fallthru
      _
    // Predicated region
    $region46: #{merge_layer.1} parent=1 // pred_check
      _
    $region47: #{merge_layer.1} parent=1 // pred_check_branch
      %89 = sbr.rel (0) target = $region49
    $region48: #{merge_layer.1} parent=1 // pred_region
      %90 = dma.done [#allocation9], 2048
    $region49: #{merge_layer.1} parent=1 // pred_fallthru
      _
    %v91 = vld [vmem:[#allocation2] sm:$0xff]
    %v92 = vld [vmem:[#allocation7] sm:$0xff]
    %v93 = vld [vmem:[#allocation7 + $0x8] sm:$0xff]
    %v94 = vld [vmem:[#allocation5] sm:$0xff]
    %v95 = vld [vmem:[#allocation8] sm:$0xff]
    %v96 = vld [vmem:[#allocation8 + $0x8] sm:$0xff]
    %vm97 = vcmask 130048
    %v99 = vsel %vm97, %v94, 0
    %101 = vmatprep.subr.mxu0 0.0
    %102 = vmatpush1.msra.mxu0 %v95
    %103 = vmatprep.subr.mxu0 0.0
    %104 = vmatpush1.msra.mxu0 %v96
    %105 = vmatprep.subr.mxu0 0.0
    %106 = vmatpush1.msra.mxu0 0.0
    %107 = vmatprep.subr.mxu0 0.0
    %108 = vmatpush1.msra.mxu0 0.0
    %109 = vmatprep.subr.mxu0 0.0
    %110 = vmatpush1.msra.mxu0 0.0
    %111 = vmatprep.subr.mxu0 0.0
    %112 = vmatpush1.msra.mxu0 0.0
    %113 = vmatprep.subr.mxu0 0.0
    %114 = vmatpush1.msra.mxu0 0.0
    %115 = vmatprep.subr.mxu0 0.0
    %116 = vmatpush1.msra.mxu0 0.0
    %117 = vmatprep.subr.mxu0 0.0
    %118 = vmatpush1.msra.mxu0 0.0
    %119 = vmatprep.subr.mxu0 0.0
    %120 = vmatpush1.msra.mxu0 0.0
    %121 = vmatprep.subr.mxu0 0.0
    %122 = vmatpush1.msra.mxu0 0.0
    %123 = vmatprep.subr.mxu0 0.0
    %124 = vmatpush1.msra.mxu0 0.0
    %125 = vmatprep.subr.mxu0 0.0
    %126 = vmatpush1.msra.mxu0 0.0
    %127 = vmatprep.subr.mxu0 0.0
    %128 = vmatpush1.msra.mxu0 0.0
    %129 = vmatprep.subr.mxu0 0.0
    %130 = vmatpush1.msra.mxu0 0.0
    %131 = vmatprep.subr.mxu0 0.0
    %132 = vmatpush1.msra.mxu0 0.0
    %133 = vmatprep.subr.mxu0 0.0
    %134 = vmatpush1.msra.mxu0 0.0
    %135 = vmatprep.subr.mxu0 0.0
    %136 = vmatpush1.msra.mxu0 0.0
    %137 = vmatprep.subr.mxu0 0.0
    %138 = vmatpush1.msra.mxu0 0.0
    %139 = vmatprep.subr.mxu0 0.0
    %140 = vmatpush1.msra.mxu0 0.0
    %141 = vmatprep.subr.mxu0 0.0
    %142 = vmatpush1.msra.mxu0 0.0
    %143 = vmatprep.subr.mxu0 0.0
    %144 = vmatpush1.msra.mxu0 0.0
    %145 = vmatprep.subr.mxu0 0.0
    %146 = vmatpush1.msra.mxu0 0.0
    %147 = vmatprep.subr.mxu0 0.0
    %148 = vmatpush1.msra.mxu0 0.0
    %149 = vmatprep.subr.mxu0 0.0
    %150 = vmatpush1.msra.mxu0 0.0
    %151 = vmatprep.subr.mxu0 0.0
    %152 = vmatpush1.msra.mxu0 0.0
    %153 = vmatprep.subr.mxu0 0.0
    %154 = vmatpush1.msra.mxu0 0.0
    %155 = vmatprep.subr.mxu0 0.0
    %156 = vmatpush1.msra.mxu0 0.0
    %157 = vmatprep.subr.mxu0 0.0
    %158 = vmatpush1.msra.mxu0 0.0
    %159 = vmatprep.subr.mxu0 0.0
    %160 = vmatpush1.msra.mxu0 0.0
    %161 = vmatprep.subr.mxu0 0.0
    %162 = vmatpush1.msra.mxu0 0.0
    %163 = vmatprep.subr.mxu0 0.0
    %164 = vmatpush1.msra.mxu0 0.0
    %165 = vmatprep.mubr.f32.mxu0 0.0
    %166 = vmatmul.mubr.f32.gmra.mrb[0].mxu0 %v99
    %v167 = vpop.f32.mrb[0].mxu0
    %v168 = vadd.f32 0.0, %v167
    %v169 = vpop.f32.mrb[0].mxu0
    %170 = vdwg.mxu0
    %v172 = vsel %vm97, %v91, 0
    %174 = vmatprep.subr.mxu0 0.0
    %175 = vmatpush1.msra.mxu0 %v92
    %176 = vmatprep.subr.mxu0 0.0
    %177 = vmatpush1.msra.mxu0 %v93
    %178 = vmatprep.subr.mxu0 0.0
    %179 = vmatpush1.msra.mxu0 0.0
    %180 = vmatprep.subr.mxu0 0.0
    %181 = vmatpush1.msra.mxu0 0.0
    %182 = vmatprep.subr.mxu0 0.0
    %183 = vmatpush1.msra.mxu0 0.0
    %184 = vmatprep.subr.mxu0 0.0
    %185 = vmatpush1.msra.mxu0 0.0
    %186 = vmatprep.subr.mxu0 0.0
    %187 = vmatpush1.msra.mxu0 0.0
    %188 = vmatprep.subr.mxu0 0.0
    %189 = vmatpush1.msra.mxu0 0.0
    %190 = vmatprep.subr.mxu0 0.0
    %191 = vmatpush1.msra.mxu0 0.0
    %192 = vmatprep.subr.mxu0 0.0
    %193 = vmatpush1.msra.mxu0 0.0
    %194 = vmatprep.subr.mxu0 0.0
    %195 = vmatpush1.msra.mxu0 0.0
    %196 = vmatprep.subr.mxu0 0.0
    %197 = vmatpush1.msra.mxu0 0.0
    %198 = vmatprep.subr.mxu0 0.0
    %199 = vmatpush1.msra.mxu0 0.0
    %200 = vmatprep.subr.mxu0 0.0
    %201 = vmatpush1.msra.mxu0 0.0
    %202 = vmatprep.subr.mxu0 0.0
    %203 = vmatpush1.msra.mxu0 0.0
    %204 = vmatprep.subr.mxu0 0.0
    %205 = vmatpush1.msra.mxu0 0.0
    %206 = vmatprep.subr.mxu0 0.0
    %207 = vmatpush1.msra.mxu0 0.0
    %208 = vmatprep.subr.mxu0 0.0
    %209 = vmatpush1.msra.mxu0 0.0
    %210 = vmatprep.subr.mxu0 0.0
    %211 = vmatpush1.msra.mxu0 0.0
    %212 = vmatprep.subr.mxu0 0.0
    %213 = vmatpush1.msra.mxu0 0.0
    %214 = vmatprep.subr.mxu0 0.0
    %215 = vmatpush1.msra.mxu0 0.0
    %216 = vmatprep.subr.mxu0 0.0
    %217 = vmatpush1.msra.mxu0 0.0
    %218 = vmatprep.subr.mxu0 0.0
    %219 = vmatpush1.msra.mxu0 0.0
    %220 = vmatprep.subr.mxu0 0.0
    %221 = vmatpush1.msra.mxu0 0.0
    %222 = vmatprep.subr.mxu0 0.0
    %223 = vmatpush1.msra.mxu0 0.0
    %224 = vmatprep.subr.mxu0 0.0
    %225 = vmatpush1.msra.mxu0 0.0
    %226 = vmatprep.subr.mxu0 0.0
    %227 = vmatpush1.msra.mxu0 0.0
    %228 = vmatprep.subr.mxu0 0.0
    %229 = vmatpush1.msra.mxu0 0.0
    %230 = vmatprep.subr.mxu0 0.0
    %231 = vmatpush1.msra.mxu0 0.0
    %232 = vmatprep.subr.mxu0 0.0
    %233 = vmatpush1.msra.mxu0 0.0
    %234 = vmatprep.subr.mxu0 0.0
    %235 = vmatpush1.msra.mxu0 0.0
    %236 = vmatprep.subr.mxu0 0.0
    %237 = vmatpush1.msra.mxu0 0.0
    %238 = vmatprep.mubr.f32.mxu0 0.0
    %239 = vmatmul.mubr.f32.gmra.mrb[0].mxu0 %v172
    %v240 = vpop.f32.mrb[0].mxu0
    %v241 = vadd.f32 %v168, %v240
    %v242 = vpop.f32.mrb[0].mxu0
    %243 = vdwg.mxu0
    %v244 = vld [vmem:[%s4] sm:$0x1]
    %v246 = vlaneseq
    %v247 = vshrl.u32 %v246, 7
    %v248 = vsub.s32 0, %v247
    %v249 = vrot.slane %v244, %v248
    %v251 = vadd.f32 %v241, %v249
    %v252 = vmax.f32 %v251, 0.0
    %v253 = vld [vmem:[#allocation10] sm:$0xff]
    %v254 = vld [vmem:[#allocation10 + $0x8] sm:$0xff]
    %v255 = vld [vmem:[#allocation10 + $0x10] sm:$0xff]
    %v256 = vld [vmem:[#allocation10 + $0x18] sm:$0xff]
    %v257 = vld [vmem:[#allocation10 + $0x20] sm:$0xff]
    %v258 = vld [vmem:[#allocation10 + $0x28] sm:$0xff]
    %v259 = vld [vmem:[#allocation10 + $0x30] sm:$0xff]
    %v260 = vld [vmem:[#allocation10 + $0x38] sm:$0xff]
    %v261 = vld [vmem:[#allocation10 + $0x40] sm:$0xff]
    %v262 = vld [vmem:[#allocation10 + $0x48] sm:$0xff]
    %v263 = vld [vmem:[#allocation10 + $0x50] sm:$0xff]
    %v264 = vld [vmem:[#allocation10 + $0x58] sm:$0xff]
    %v265 = vld [vmem:[#allocation10 + $0x60] sm:$0xff]
    %v266 = vld [vmem:[#allocation10 + $0x68] sm:$0xff]
    %v267 = vld [vmem:[#allocation10 + $0x70] sm:$0xff]
    %v268 = vld [vmem:[#allocation10 + $0x78] sm:$0xff]
    %v269 = vld [vmem:[%s6] sm:$0x1]
    %v271 = vlaneseq
    %v272 = vshrl.u32 %v271, 7
    %v273 = vsub.s32 0, %v272
    %v274 = vrot.slane %v269, %v273
    %276 = vmatprep.subr.mxu0 0.0
    %277 = vmatpush1.msra.mxu0 %v253
    %278 = vmatprep.subr.mxu0 0.0
    %279 = vmatpush1.msra.mxu0 %v254
    %280 = vmatprep.subr.mxu0 0.0
    %281 = vmatpush1.msra.mxu0 %v255
    %282 = vmatprep.subr.mxu0 0.0
    %283 = vmatpush1.msra.mxu0 %v256
    %284 = vmatprep.subr.mxu0 0.0
    %285 = vmatpush1.msra.mxu0 %v257
    %286 = vmatprep.subr.mxu0 0.0
    %287 = vmatpush1.msra.mxu0 %v258
    %288 = vmatprep.subr.mxu0 0.0
    %289 = vmatpush1.msra.mxu0 %v259
    %290 = vmatprep.subr.mxu0 0.0
    %291 = vmatpush1.msra.mxu0 %v260
    %292 = vmatprep.subr.mxu0 0.0
    %293 = vmatpush1.msra.mxu0 %v261
    %294 = vmatprep.subr.mxu0 0.0
    %295 = vmatpush1.msra.mxu0 %v262
    %296 = vmatprep.subr.mxu0 0.0
    %297 = vmatpush1.msra.mxu0 %v263
    %298 = vmatprep.subr.mxu0 0.0
    %299 = vmatpush1.msra.mxu0 %v264
    %300 = vmatprep.subr.mxu0 0.0
    %301 = vmatpush1.msra.mxu0 %v265
    %302 = vmatprep.subr.mxu0 0.0
    %303 = vmatpush1.msra.mxu0 %v266
    %304 = vmatprep.subr.mxu0 0.0
    %305 = vmatpush1.msra.mxu0 %v267
    %306 = vmatprep.subr.mxu0 0.0
    %307 = vmatpush1.msra.mxu0 %v268
    %308 = vmatprep.subr.mxu0 0.0
    %309 = vmatpush1.msra.mxu0 0.0
    %310 = vmatprep.subr.mxu0 0.0
    %311 = vmatpush1.msra.mxu0 0.0
    %312 = vmatprep.subr.mxu0 0.0
    %313 = vmatpush1.msra.mxu0 0.0
    %314 = vmatprep.subr.mxu0 0.0
    %315 = vmatpush1.msra.mxu0 0.0
    %316 = vmatprep.subr.mxu0 0.0
    %317 = vmatpush1.msra.mxu0 0.0
    %318 = vmatprep.subr.mxu0 0.0
    %319 = vmatpush1.msra.mxu0 0.0
    %320 = vmatprep.subr.mxu0 0.0
    %321 = vmatpush1.msra.mxu0 0.0
    %322 = vmatprep.subr.mxu0 0.0
    %323 = vmatpush1.msra.mxu0 0.0
    %324 = vmatprep.subr.mxu0 0.0
    %325 = vmatpush1.msra.mxu0 0.0
    %326 = vmatprep.subr.mxu0 0.0
    %327 = vmatpush1.msra.mxu0 0.0
    %328 = vmatprep.subr.mxu0 0.0
    %329 = vmatpush1.msra.mxu0 0.0
    %330 = vmatprep.subr.mxu0 0.0
    %331 = vmatpush1.msra.mxu0 0.0
    %332 = vmatprep.subr.mxu0 0.0
    %333 = vmatpush1.msra.mxu0 0.0
    %334 = vmatprep.subr.mxu0 0.0
    %335 = vmatpush1.msra.mxu0 0.0
    %336 = vmatprep.subr.mxu0 0.0
    %337 = vmatpush1.msra.mxu0 0.0
    %338 = vmatprep.subr.mxu0 0.0
    %339 = vmatpush1.msra.mxu0 0.0
    %340 = vmatprep.mubr.f32.mxu0 0.0
    %341 = vmatmul.mubr.f32.gmra.mrb[0].mxu0 %v252
    %v342 = vpop.f32.mrb[0].mxu0
    %v343 = vadd.f32 %v274, %v342
    %v344 = vpop.f32.mrb[0].mxu0
    %345 = vdwg.mxu0
    %346 = vst [vmem:[#allocation11] sm:$0xff] %v343
    // Predicated region
    $region50: #{merge_layer.1} parent=1 // pred_check
      _
    $region51: #{merge_layer.1} parent=1 // pred_check_branch
      %348 = sbr.rel (0) target = $region53
    $region52: #{merge_layer.1} parent=1 // pred_region
      %s350 = ssub.s32 128, 128
      %351 = vsyncadd [#allocation4], %s350
      %s353 = sshll.u32 [#allocation11], 4
      %s354 = int_to_ptr.vmem [resolvable:$true] %s353
      %356 = dma.vmem_to_hbm [thread:$0]  %s354, 128, %s7, [#allocation4]
    $region53: #{merge_layer.1} parent=1 // pred_fallthru
      _
    // Predicated region
    $region54: #{merge_layer.1} parent=1 // pred_check
      _
    $region55: #{merge_layer.1} parent=1 // pred_check_branch
      %358 = sbr.rel (0) target = $region57
    $region56: #{merge_layer.1} parent=1 // pred_region
      %359 = dma.done [#allocation4], 128
    $region57: #{merge_layer.1} parent=1 // pred_fallthru
      _
    %360 = vsyncpa [#allocation3], 1
    %361 = vsyncpa [#allocation6], 1
    %362 = vsyncpa [#allocation9], 1
    %363 = vsyncpa [#allocation4], 1

</llo_original>
